<compile_context>
chip_gen: v6e
topology: v6e:2x2x1
jax: 0.10.0
libtpu: 0.0.40
codegen_flags: <defaults>
</compile_context>

<pallas_src>
import jax
import jax.numpy as jnp
from jax.experimental import pallas as pl
from jax.experimental.pallas import tpu as pltpu


def _round_up(x, m):
    return ((x + m - 1) // m) * m


def _device_kind():
    try:
        return jax.devices()[0].device_kind.lower()
    except Exception:
        return ""


def _default_block_b():
    kind = _device_kind()
    if "v5" in kind:
        return 4096   # v5e: 16 MiB default scoped VMEM -> keep double-buffered tiles well inside it
    if "v6" in kind or "v7" in kind or "tpu7" in kind:
        return 8192   # 32 MiB default scoped VMEM
    return 2048


def _min_grid_steps():
    kind = _device_kind()
    # v7x has 2 TensorCores/chip; keep the grid at least 2 steps long so the
    # "parallel" batch axis gives both cores work.
    return 2 if ("v7" in kind or "tpu7" in kind) else 1


def _mlp_ctx_kernel(ctx_ref, w1_ref, b1_ref, w2_ref, b2_ref, out_ref):
    # ctx: (bb, Din)  w1: (Din, H)  b1: (1, H)  w2: (H, H)  b2: (1, H)
    # out: (bb, H)  or the lane-dense (bb//f, f*H) view of the same row-major bytes.
    x = ctx_ref[...]

    # fc1 + ReLU (dropout = identity in eval mode); f32 MXU accumulation.
    h = jnp.dot(x, w1_ref[...], preferred_element_type=jnp.float32) + b1_ref[...]
    h = jnp.maximum(h, 0.0)

    # fc2 + ReLU.
    o = jnp.dot(h, w2_ref[...], preferred_element_type=jnp.float32) + b2_ref[...]
    o = jnp.maximum(o, 0.0)

    # Relayout to the (possibly lane-dense) output block shape. The reshape is an
    # XLU sublane->lane shuffle; the XLU has plenty of slack in this kernel.
    out_ref[...] = o.reshape(out_ref.shape).astype(out_ref.dtype)


def _reference_forward(ctx, w1, b1, w2, b2):
    """Plain-JAX transcription of the PyTorch forward (eval mode)."""
    h = jax.nn.relu(jnp.dot(ctx.astype(jnp.float32), w1) + b1)
    return jax.nn.relu(jnp.dot(h, w2) + b2)


def mlp_context_encoder(ctx, w1, b1, w2, b2, *, block_b=None, use_pallas=None,
                        out_dtype=None):
    """ctx: (B, num_ent*dim_ent) f32/bf16. Weights stored (in, out). Returns (B, nembed_ctx)."""
    if ctx.dtype not in (jnp.float32, jnp.bfloat16):
        ctx = ctx.astype(jnp.float32)
    if b1.ndim == 1:
        b1 = b1.reshape(1, -1)
    if b2.ndim == 1:
        b2 = b2.reshape(1, -1)
    w1 = w1.astype(jnp.float32)
    b1 = b1.astype(jnp.float32)
    w2 = w2.astype(jnp.float32)
    b2 = b2.astype(jnp.float32)

    B, Din = ctx.shape
    H = w1.shape[1]
    if out_dtype is None:
        out_dtype = ctx.dtype

    # Tiny (dialogue-sized) batches are pure dispatch overhead for a custom kernel;
    # a fused XLA dot is strictly faster there.
    if use_pallas is None:
        use_pallas = B >= 256
    if not use_pallas:
        return _reference_forward(ctx, w1, b1, w2, b2).astype(out_dtype)

    if block_b is None:
        block_b = _default_block_b()

    # Lane-dense output: view the row-major (B, H) output as (B//f, f*H) with
    # f*H == 128, so the store is a full-width vst (no vst.msk) and the output
    # tile doesn't pay 128/H lane padding in VMEM.
    fold = 128 // H if (H <= 128 and 128 % H == 0) else 1
    lane_dense = fold > 1 and (B % fold == 0)
    align = 8 * fold if lane_dense else 8

    # Batch tile: largest tile (capped at block_b) that keeps the grid at least
    # _min_grid_steps() long and (8,128)-aligned.
    steps = max(_min_grid_steps(), pl.cdiv(B, block_b))
    bb = _round_up(pl.cdiv(B, steps), align)
    if bb >= B:
        bb = B                       # single full-array block (always legal)
    grid = (pl.cdiv(B, bb),)
    lane_dense = lane_dense and (bb == B or bb % (8 * fold) == 0)

    if lane_dense:
        out_shape = jax.ShapeDtypeStruct((B // fold, fold * H), out_dtype)
        out_spec = pl.BlockSpec((bb // fold, fold * H), lambda i: (i, 0))
    else:
        out_shape = jax.ShapeDtypeStruct((B, H), out_dtype)
        out_spec = pl.BlockSpec((bb, H), lambda i: (i, 0))

    # Whole-array blocks with a constant index_map: the pipeline sees the same
    # block index every step, so the ~9 KB of weights/biases are DMA'd into VMEM
    # once and stay resident (no per-step re-copy).
    resident = lambda shape: pl.BlockSpec(shape, lambda i: (0, 0))

    cost = pl.CostEstimate(
        flops=2 * B * (Din * H + H * H),
        bytes_accessed=(ctx.dtype.itemsize * B * Din
                        + jnp.dtype(out_dtype).itemsize * B * H
                        + 4 * (Din * H + H * H + 2 * H)),
        transcendentals=0)

    out = pl.pallas_call(
        _mlp_ctx_kernel,
        out_shape=out_shape,
        grid=grid,
        in_specs=[
            pl.BlockSpec((bb, Din), lambda i: (i, 0)),   # ctx: tiled over batch
            resident((Din, H)),                          # w1
            resident((1, H)),                            # b1
            resident((H, H)),                            # w2
            resident((1, H)),                            # b2
        ],
        out_specs=out_spec,
        compiler_params=pltpu.CompilerParams(
            dimension_semantics=("parallel",)),
        cost_estimate=cost,
    )(ctx, w1, b1, w2, b2)

    # Free row-major view back to the logical (B, H) shape.
    return out.reshape(B, H)


if __name__ == "__main__":
    # Shapes implied by the module (onecommon-style domain):
    # num_ent=7, dim_ent=4 -> input dim 28 ; nembed_ctx=32 ; batch=2.
    B, NUM_ENT, DIM_ENT, NEMBED_CTX = 2, 7, 4, 32
    DIN = NUM_ENT * DIM_ENT

    key = jax.random.PRNGKey(0)
    k_ctx, k_w1, k_b1, k_w2, k_b2, k_big = jax.random.split(key, 6)

    ctx = jax.random.normal(k_ctx, (B, DIN), jnp.float32)
    # Linear weights stored (in, out) — transpose of PyTorch's (out, in) storage, same math.
    w1 = 0.1 * jax.random.normal(k_w1, (DIN, NEMBED_CTX), jnp.float32)
    b1 = 0.1 * jax.random.normal(k_b1, (1, NEMBED_CTX), jnp.float32)
    w2 = 0.1 * jax.random.normal(k_w2, (NEMBED_CTX, NEMBED_CTX), jnp.float32)
    b2 = 0.1 * jax.random.normal(k_b2, (1, NEMBED_CTX), jnp.float32)

    # 1) Module-sized batch (B=2): force the Pallas path (auto mode would take
    #    the plain-XLA small-batch fallback here).
    out = mlp_context_encoder(ctx, w1, b1, w2, b2, use_pallas=True)
    out = jax.block_until_ready(out)
    ref = _reference_forward(ctx, w1, b1, w2, b2)
    assert out.shape == (B, NEMBED_CTX)
    assert jnp.allclose(out, ref, atol=1e-5, rtol=1e-5), "mismatch vs reference (B=2)"

    # 2) Multi-block batch exercising the lane-dense output path, grid > 1 and a
    #    partial last tile (B=300 with block_b=128 -> 3 grid steps).
    B2 = 300
    ctx_big = jax.random.normal(k_big, (B2, DIN), jnp.float32)
    out_big = mlp_context_encoder(ctx_big, w1, b1.reshape(-1), w2, b2,
                                  use_pallas=True, block_b=128)
    out_big = jax.block_until_ready(out_big)
    ref_big = _reference_forward(ctx_big, w1, b1, w2, b2)
    assert out_big.shape == (B2, NEMBED_CTX)
    assert jnp.allclose(out_big, ref_big, atol=1e-4, rtol=1e-4), "mismatch vs reference (B=300)"

    # TODO(synk): nn.Dropout is treated as identity (eval mode); train-mode
    # stochastic dropout would use pltpu.prng_seed / pltpu.stateful_bernoulli.
    print("KERNEL_OK")
</pallas_src>

<mosaic_0001>
module attributes {stable_mosaic.version = 11 : i64} {
  func.func @_mlp_ctx_kernel(%arg0: i32, %arg1: memref<2x28xf32, #tpu.memory_space<vmem>>, %arg2: memref<28x32xf32, #tpu.memory_space<vmem>>, %arg3: memref<1x32xf32, #tpu.memory_space<vmem>>, %arg4: memref<32x32xf32, #tpu.memory_space<vmem>>, %arg5: memref<1x32xf32, #tpu.memory_space<vmem>>, %arg6: memref<2x32xf32, #tpu.memory_space<vmem>>) attributes {dimension_semantics = [#tpu.dimension_semantics<parallel>], iteration_bounds = array<i64: 1>, scalar_prefetch = 0 : i64, scratch_operands = 0 : i64, tpu.core_type = #tpu.core_type<tc>, window_params = [{transform_indices = @transform_0, window_bounds = array<i64: 2, 28>}, {pipeline_mode = #tpu.pipeline_mode<synchronous>, transform_indices = @transform_1, window_bounds = array<i64: 28, 32>}, {pipeline_mode = #tpu.pipeline_mode<synchronous>, transform_indices = @transform_2, window_bounds = array<i64: 1, 32>}, {pipeline_mode = #tpu.pipeline_mode<synchronous>, transform_indices = @transform_3, window_bounds = array<i64: 32, 32>}, {pipeline_mode = #tpu.pipeline_mode<synchronous>, transform_indices = @transform_4, window_bounds = array<i64: 1, 32>}, {transform_indices = @transform_5, window_bounds = array<i64: 2, 32>}]} {
    %c0 = arith.constant 0 : index
    %c0_0 = arith.constant 0 : index
    %0 = vector.load %arg1[%c0, %c0_0] : memref<2x28xf32, #tpu.memory_space<vmem>>, vector<2x28xf32>
    %c0_1 = arith.constant 0 : index
    %c0_2 = arith.constant 0 : index
    %1 = vector.load %arg2[%c0_1, %c0_2] : memref<28x32xf32, #tpu.memory_space<vmem>>, vector<28x32xf32>
    %cst = arith.constant dense<0.000000e+00> : vector<2x32xf32>
    %2 = tpu.matmul %0, %1, %cst {dimension_numbers = #tpu.dot_dimension_numbers<[1], [0], [0], [1], [0, 0, 1, 1], [], []>} : vector<2x28xf32>, vector<28x32xf32>, vector<2x32xf32> -> vector<2x32xf32>
    %c0_3 = arith.constant 0 : index
    %c0_4 = arith.constant 0 : index
    %3 = vector.load %arg3[%c0_3, %c0_4] : memref<1x32xf32, #tpu.memory_space<vmem>>, vector<1x32xf32>
    %4 = vector.broadcast %3 : vector<1x32xf32> to vector<2x32xf32>
    %5 = arith.addf %2, %4 : vector<2x32xf32>
    %cst_5 = arith.constant 0.000000e+00 : f32
    %6 = vector.broadcast %cst_5 : f32 to vector<2x32xf32>
    %7 = arith.maximumf %5, %6 : vector<2x32xf32>
    %c0_6 = arith.constant 0 : index
    %c0_7 = arith.constant 0 : index
    %8 = vector.load %arg4[%c0_6, %c0_7] : memref<32x32xf32, #tpu.memory_space<vmem>>, vector<32x32xf32>
    %cst_8 = arith.constant dense<0.000000e+00> : vector<2x32xf32>
    %9 = tpu.matmul %7, %8, %cst_8 {dimension_numbers = #tpu.dot_dimension_numbers<[1], [0], [0], [1], [0, 0, 1, 1], [], []>} : vector<2x32xf32>, vector<32x32xf32>, vector<2x32xf32> -> vector<2x32xf32>
    %c0_9 = arith.constant 0 : index
    %c0_10 = arith.constant 0 : index
    %10 = vector.load %arg5[%c0_9, %c0_10] : memref<1x32xf32, #tpu.memory_space<vmem>>, vector<1x32xf32>
    %11 = vector.broadcast %10 : vector<1x32xf32> to vector<2x32xf32>
    %12 = arith.addf %9, %11 : vector<2x32xf32>
    %cst_11 = arith.constant 0.000000e+00 : f32
    %13 = vector.broadcast %cst_11 : f32 to vector<2x32xf32>
    %14 = arith.maximumf %12, %13 : vector<2x32xf32>
    %c0_12 = arith.constant 0 : index
    %c0_13 = arith.constant 0 : index
    %15 = vector.load %arg6[%c0_12, %c0_13] : memref<2x32xf32, #tpu.memory_space<vmem>>, vector<2x32xf32>
    tpu.vector_store %arg6[%c0_12, %c0_13], %14 {strides = array<i32>} : memref<2x32xf32, #tpu.memory_space<vmem>>, vector<2x32xf32>,
    return
  }
  func.func @transform_0(%arg0: i32) -> (i32, i32) {
    %c0_i32 = arith.constant 0 : i32
    %c0_i32_0 = arith.constant 0 : i32
    return %arg0, %c0_i32 : i32, i32
  }
  func.func @transform_1(%arg0: i32) -> (i32, i32) {
    %c0_i32 = arith.constant 0 : i32
    %c0_i32_0 = arith.constant 0 : i32
    %c0_i32_1 = arith.constant 0 : i32
    return %c0_i32, %c0_i32_0 : i32, i32
  }
  func.func @transform_2(%arg0: i32) -> (i32, i32) {
    %c0_i32 = arith.constant 0 : i32
    %c0_i32_0 = arith.constant 0 : i32
    %c0_i32_1 = arith.constant 0 : i32
    return %c0_i32, %c0_i32_0 : i32, i32
  }
  func.func @transform_3(%arg0: i32) -> (i32, i32) {
    %c0_i32 = arith.constant 0 : i32
    %c0_i32_0 = arith.constant 0 : i32
    %c0_i32_1 = arith.constant 0 : i32
    return %c0_i32, %c0_i32_0 : i32, i32
  }
  func.func @transform_4(%arg0: i32) -> (i32, i32) {
    %c0_i32 = arith.constant 0 : i32
    %c0_i32_0 = arith.constant 0 : i32
    %c0_i32_1 = arith.constant 0 : i32
    return %c0_i32, %c0_i32_0 : i32, i32
  }
  func.func @transform_5(%arg0: i32) -> (i32, i32) {
    %c0_i32 = arith.constant 0 : i32
    %c0_i32_0 = arith.constant 0 : i32
    return %arg0, %c0_i32 : i32, i32
  }
}

</mosaic_0001>

<llo_original>
// kernel: tpu_custom_call.1
$region0: #{tpu_custom_call.1}
  #allocation0 [shape = 'u32[]', space=smem, size = 0x4, offset = 0x4, fixed_abs, tag = 'smem constant byte address 0x4 - core index']
  #allocation1 [shape = 'u32[144,128]{1,0:T(1,128)}', space=vmem, size = 0x12000, scoped, tag = 'internal scratch']
  %s0 = inlined_call_operand.hbm [shape: f32[2,28], index: 0, kind: input, shape index: {}]
  %s1 = inlined_call_operand.hbm [shape: f32[28,32], index: 1, kind: input, shape index: {}]
  %s2 = inlined_call_operand.vmem [shape: f32[1,32], index: 2, kind: input, shape index: {}]
  %s3 = inlined_call_operand.hbm [shape: f32[32,32], index: 3, kind: input, shape index: {}]
  %s4 = inlined_call_operand.vmem [shape: f32[1,32], index: 4, kind: input, shape index: {}]
  %s5 = inlined_call_operand.hbm [shape: f32[2,32], index: 5, kind: output, shape index: {}]
  %s6 = sld [smem:[#allocation0]]
  $region42: #{tpu_custom_call.1} parent=0
    _
  %s8 = ssub.s32 1, %s6
  %s9 = scalar_select 0, %s8, %s6
  $region1: #{tpu_custom_call.1} parent=0
    #allocation2 [shape = 'u8[1024]{0}', space=vmem, size = 0x400, scoped, tag = 'input window, operand 0, single buffered']
    #allocation3 [shape = 's32[1]{0}', space=sflag, size = 0x4, scoped, tag = 'scoped memory for tpu_custom_call.1']
    #allocation4 [shape = 's32[1]{0}', space=sflag, size = 0x4, scoped, tag = 'scoped memory for tpu_custom_call.1']
    #allocation5 [shape = 'u8[16384]{0}', space=vmem, size = 0x4000, scoped, tag = 'input window, operand 1, single buffered']
    #allocation6 [shape = 's32[1]{0}', space=sflag, size = 0x4, scoped, tag = 'scoped memory for tpu_custom_call.1']
    #allocation7 [shape = 'u8[16384]{0}', space=vmem, size = 0x4000, scoped, tag = 'input window, operand 3, single buffered']
    #allocation8 [shape = 'u8[1024]{0}', space=vmem, size = 0x400, scoped, tag = 'output window, operand 0, single buffered']
    %10 = vsyncpa [#allocation3], 0
    %11 = vsyncpa [#allocation6], 0
    %12 = vsyncpa [#allocation4], 0
    // Predicated region
    $region2: #{tpu_custom_call.1} parent=1 // pred_check
      _
    $region3: #{tpu_custom_call.1} parent=1 // pred_check_branch
      %14 = sbr.rel (0) target = $region5
    $region4: #{tpu_custom_call.1} parent=1 // pred_region
      %s16 = ssub.s32 32, 32
      %17 = vsyncadd [#allocation3], %s16
      %s19 = sshll.u32 [#allocation2], 4
      %s20 = int_to_ptr.vmem [resolvable:$true] %s19
      %22 = dma.hbm_to_vmem [thread:$0]  %s0, 32, %s20, [#allocation3]
    $region5: #{tpu_custom_call.1} parent=1 // pred_fallthru
      _
    // Predicated region
    $region6: #{tpu_custom_call.1} parent=1 // pred_check
      _
    $region7: #{tpu_custom_call.1} parent=1 // pred_check_branch
      %24 = sbr.rel (0) target = $region9
    $region8: #{tpu_custom_call.1} parent=1 // pred_region
      %s26 = ssub.s32 512, 512
      %27 = vsyncadd [#allocation6], %s26
      %s28 = sshll.u32 [#allocation5], 4
      %s29 = int_to_ptr.vmem [resolvable:$true] %s28
      %34 = dma.hbm_to_vmem [thread:$0]  %s1, 512, %s29, [#allocation6], 128, 128, 8
    $region9: #{tpu_custom_call.1} parent=1 // pred_fallthru
      _
    // Predicated region
    $region10: #{tpu_custom_call.1} parent=1 // pred_check
      _
    $region11: #{tpu_custom_call.1} parent=1 // pred_check_branch
      %36 = sbr.rel (0) target = $region13
    $region12: #{tpu_custom_call.1} parent=1 // pred_region
      _
    $region13: #{tpu_custom_call.1} parent=1 // pred_fallthru
      _
    // Predicated region
    $region14: #{tpu_custom_call.1} parent=1 // pred_check
      _
    $region15: #{tpu_custom_call.1} parent=1 // pred_check_branch
      %38 = sbr.rel (0) target = $region17
    $region16: #{tpu_custom_call.1} parent=1 // pred_region
      %s40 = ssub.s32 512, 512
      %41 = vsyncadd [#allocation6], %s40
      %s42 = sshll.u32 [#allocation7], 4
      %s43 = int_to_ptr.vmem [resolvable:$true] %s42
      %48 = dma.hbm_to_vmem [thread:$0]  %s3, 512, %s43, [#allocation6], 128, 128, 8
    $region17: #{tpu_custom_call.1} parent=1 // pred_fallthru
      _
    // Predicated region
    $region18: #{tpu_custom_call.1} parent=1 // pred_check
      _
    $region19: #{tpu_custom_call.1} parent=1 // pred_check_branch
      %50 = sbr.rel (0) target = $region21
    $region20: #{tpu_custom_call.1} parent=1 // pred_region
      _
    $region21: #{tpu_custom_call.1} parent=1 // pred_fallthru
      _
    // Predicated region
    $region22: #{tpu_custom_call.1} parent=1 // pred_check
      _
    $region23: #{tpu_custom_call.1} parent=1 // pred_check_branch
      %52 = sbr.rel (0) target = $region25
    $region24: #{tpu_custom_call.1} parent=1 // pred_region
      %53 = dma.done [#allocation3], 32
    $region25: #{tpu_custom_call.1} parent=1 // pred_fallthru
      _
    // Predicated region
    $region26: #{tpu_custom_call.1} parent=1 // pred_check
      _
    $region27: #{tpu_custom_call.1} parent=1 // pred_check_branch
      %55 = sbr.rel (0) target = $region29
    $region28: #{tpu_custom_call.1} parent=1 // pred_region
      %56 = dma.done [#allocation6], 512
    $region29: #{tpu_custom_call.1} parent=1 // pred_fallthru
      _
    // Predicated region
    $region30: #{tpu_custom_call.1} parent=1 // pred_check
      _
    $region31: #{tpu_custom_call.1} parent=1 // pred_check_branch
      %58 = sbr.rel (0) target = $region33
    $region32: #{tpu_custom_call.1} parent=1 // pred_region
      %59 = dma.done [#allocation6], 512
    $region33: #{tpu_custom_call.1} parent=1 // pred_fallthru
      _
    %v60 = vld [vmem:[#allocation2] sm:$0x3]
    %v61 = vld [vmem:[#allocation5] sm:$0xff]
    %v62 = vld [vmem:[#allocation5 + $0x8] sm:$0xff]
    %v63 = vld [vmem:[#allocation5 + $0x10] sm:$0xff]
    %v64 = vld [vmem:[#allocation5 + $0x18] sm:$0xf]
    %v65 = vld [vmem:[%s2] sm:$0x1]
    %v67 = vlaneseq
    %v68 = vshrl.u32 %v67, 7
    %v69 = vsub.s32 0, %v68
    %v70 = vrot.slane %v65, %v69
    %vm72 = vcmask 228352
    %v74 = vsel %vm72, %v60, 0
    %vm76 = vcmask 1043456
    %v78 = vsel %vm76, %v64, 0
    %80 = vmatprep.subr.mxu0 0.0
    %81 = vmatpush1.msra.mxu0 0.0
    %82 = vmatprep.subr.mxu0 0.0
    %83 = vmatpush1.msra.mxu0 0.0
    %84 = vmatprep.subr.mxu0 0.0
    %85 = vmatpush1.msra.mxu0 0.0
    %86 = vmatprep.subr.mxu0 0.0
    %87 = vmatpush1.msra.mxu0 0.0
    %88 = vmatprep.subr.mxu0 0.0
    %89 = vmatpush1.msra.mxu0 0.0
    %90 = vmatprep.subr.mxu0 0.0
    %91 = vmatpush1.msra.mxu0 0.0
    %92 = vmatprep.subr.mxu0 0.0
    %93 = vmatpush1.msra.mxu0 0.0
    %94 = vmatprep.subr.mxu0 0.0
    %95 = vmatpush1.msra.mxu0 0.0
    %96 = vmatprep.subr.mxu0 0.0
    %97 = vmatpush1.msra.mxu0 0.0
    %98 = vmatprep.subr.mxu0 0.0
    %99 = vmatpush1.msra.mxu0 0.0
    %100 = vmatprep.subr.mxu0 0.0
    %101 = vmatpush1.msra.mxu0 0.0
    %102 = vmatprep.subr.mxu0 0.0
    %103 = vmatpush1.msra.mxu0 0.0
    %104 = vmatprep.subr.mxu0 0.0
    %105 = vmatpush1.msra.mxu0 %v78
    %106 = vmatprep.subr.mxu0 0.0
    %107 = vmatpush1.msra.mxu0 %v63
    %108 = vmatprep.subr.mxu0 0.0
    %109 = vmatpush1.msra.mxu0 %v62
    %110 = vmatprep.subr.mxu0 0.0
    %111 = vmatpush1.msra.mxu0 %v61
    %112 = vmatprep.subr.mxu0 0.0
    %113 = vmatpush2.msra.mxu0 0.0
    %114 = vmatprep.subr.mxu0 0.0
    %115 = vmatpush2.msra.mxu0 0.0
    %116 = vmatprep.subr.mxu0 0.0
    %117 = vmatpush2.msra.mxu0 0.0
    %118 = vmatprep.subr.mxu0 0.0
    %119 = vmatpush2.msra.mxu0 0.0
    %120 = vmatprep.subr.mxu0 0.0
    %121 = vmatpush2.msra.mxu0 0.0
    %122 = vmatprep.subr.mxu0 0.0
    %123 = vmatpush2.msra.mxu0 0.0
    %124 = vmatprep.subr.mxu0 0.0
    %125 = vmatpush2.msra.mxu0 0.0
    %126 = vmatprep.subr.mxu0 0.0
    %127 = vmatpush2.msra.mxu0 0.0
    %128 = vmatprep.subr.mxu0 0.0
    %129 = vmatpush2.msra.mxu0 0.0
    %130 = vmatprep.subr.mxu0 0.0
    %131 = vmatpush2.msra.mxu0 0.0
    %132 = vmatprep.subr.mxu0 0.0
    %133 = vmatpush2.msra.mxu0 0.0
    %134 = vmatprep.subr.mxu0 0.0
    %135 = vmatpush2.msra.mxu0 0.0
    %136 = vmatprep.subr.mxu0 0.0
    %137 = vmatpush2.msra.mxu0 0.0
    %138 = vmatprep.subr.mxu0 0.0
    %139 = vmatpush2.msra.mxu0 0.0
    %140 = vmatprep.subr.mxu0 0.0
    %141 = vmatpush2.msra.mxu0 0.0
    %142 = vmatprep.subr.mxu0 0.0
    %143 = vmatpush2.msra.mxu0 0.0
    %144 = vmatprep.mubr.f32.mxu0 0.0
    %145 = vmatmul.mubr.f32.gmra.mxu0 %v74
    %v146 = vpop.f32.mrf.mxu0
    %v147 = vadd.f32 %v70, %v146
    %v148 = vpop.f32.mrf.mxu0
    %149 = vdwg.mxu0
    %v150 = vmax.f32 %v147, 0.0
    %v151 = vld [vmem:[#allocation7] sm:$0xff]
    %v152 = vld [vmem:[#allocation7 + $0x8] sm:$0xff]
    %v153 = vld [vmem:[#allocation7 + $0x10] sm:$0xff]
    %v154 = vld [vmem:[#allocation7 + $0x18] sm:$0xff]
    %v155 = vld [vmem:[%s4] sm:$0x1]
    %v157 = vlaneseq
    %v158 = vshrl.u32 %v157, 7
    %v159 = vsub.s32 0, %v158
    %v160 = vrot.slane %v155, %v159
    %vm162 = vcmask 261120
    %v164 = vsel %vm162, %v150, 0
    %166 = vmatprep.subr.mxu0 0.0
    %167 = vmatpush1.msra.mxu0 0.0
    %168 = vmatprep.subr.mxu0 0.0
    %169 = vmatpush1.msra.mxu0 0.0
    %170 = vmatprep.subr.mxu0 0.0
    %171 = vmatpush1.msra.mxu0 0.0
    %172 = vmatprep.subr.mxu0 0.0
    %173 = vmatpush1.msra.mxu0 0.0
    %174 = vmatprep.subr.mxu0 0.0
    %175 = vmatpush1.msra.mxu0 0.0
    %176 = vmatprep.subr.mxu0 0.0
    %177 = vmatpush1.msra.mxu0 0.0
    %178 = vmatprep.subr.mxu0 0.0
    %179 = vmatpush1.msra.mxu0 0.0
    %180 = vmatprep.subr.mxu0 0.0
    %181 = vmatpush1.msra.mxu0 0.0
    %182 = vmatprep.subr.mxu0 0.0
    %183 = vmatpush1.msra.mxu0 0.0
    %184 = vmatprep.subr.mxu0 0.0
    %185 = vmatpush1.msra.mxu0 0.0
    %186 = vmatprep.subr.mxu0 0.0
    %187 = vmatpush1.msra.mxu0 0.0
    %188 = vmatprep.subr.mxu0 0.0
    %189 = vmatpush1.msra.mxu0 0.0
    %190 = vmatprep.subr.mxu0 0.0
    %191 = vmatpush1.msra.mxu0 %v154
    %192 = vmatprep.subr.mxu0 0.0
    %193 = vmatpush1.msra.mxu0 %v153
    %194 = vmatprep.subr.mxu0 0.0
    %195 = vmatpush1.msra.mxu0 %v152
    %196 = vmatprep.subr.mxu0 0.0
    %197 = vmatpush1.msra.mxu0 %v151
    %198 = vmatprep.subr.mxu0 0.0
    %199 = vmatpush2.msra.mxu0 0.0
    %200 = vmatprep.subr.mxu0 0.0
    %201 = vmatpush2.msra.mxu0 0.0
    %202 = vmatprep.subr.mxu0 0.0
    %203 = vmatpush2.msra.mxu0 0.0
    %204 = vmatprep.subr.mxu0 0.0
    %205 = vmatpush2.msra.mxu0 0.0
    %206 = vmatprep.subr.mxu0 0.0
    %207 = vmatpush2.msra.mxu0 0.0
    %208 = vmatprep.subr.mxu0 0.0
    %209 = vmatpush2.msra.mxu0 0.0
    %210 = vmatprep.subr.mxu0 0.0
    %211 = vmatpush2.msra.mxu0 0.0
    %212 = vmatprep.subr.mxu0 0.0
    %213 = vmatpush2.msra.mxu0 0.0
    %214 = vmatprep.subr.mxu0 0.0
    %215 = vmatpush2.msra.mxu0 0.0
    %216 = vmatprep.subr.mxu0 0.0
    %217 = vmatpush2.msra.mxu0 0.0
    %218 = vmatprep.subr.mxu0 0.0
    %219 = vmatpush2.msra.mxu0 0.0
    %220 = vmatprep.subr.mxu0 0.0
    %221 = vmatpush2.msra.mxu0 0.0
    %222 = vmatprep.subr.mxu0 0.0
    %223 = vmatpush2.msra.mxu0 0.0
    %224 = vmatprep.subr.mxu0 0.0
    %225 = vmatpush2.msra.mxu0 0.0
    %226 = vmatprep.subr.mxu0 0.0
    %227 = vmatpush2.msra.mxu0 0.0
    %228 = vmatprep.subr.mxu0 0.0
    %229 = vmatpush2.msra.mxu0 0.0
    %230 = vmatprep.mubr.f32.mxu0 0.0
    %231 = vmatmul.mubr.f32.gmra.mxu0 %v164
    %v232 = vpop.f32.mrf.mxu0
    %v233 = vadd.f32 %v160, %v232
    %v234 = vpop.f32.mrf.mxu0
    %235 = vdwg.mxu0
    %v236 = vmax.f32 %v233, 0.0
    %vm237 = vcmask 254976
    %238 = vst.msk [vmem:[#allocation8] sm:$0x3] %vm237, %v236
    // Predicated region
    $region34: #{tpu_custom_call.1} parent=1 // pred_check
      _
    $region35: #{tpu_custom_call.1} parent=1 // pred_check_branch
      %240 = sbr.rel (0) target = $region37
    $region36: #{tpu_custom_call.1} parent=1 // pred_region
      %s242 = ssub.s32 32, 32
      %243 = vsyncadd [#allocation4], %s242
      %s245 = sshll.u32 [#allocation8], 4
      %s246 = int_to_ptr.vmem [resolvable:$true] %s245
      %248 = dma.vmem_to_hbm [thread:$0]  %s246, 32, %s5, [#allocation4]
    $region37: #{tpu_custom_call.1} parent=1 // pred_fallthru
      _
    // Predicated region
    $region38: #{tpu_custom_call.1} parent=1 // pred_check
      _
    $region39: #{tpu_custom_call.1} parent=1 // pred_check_branch
      %250 = sbr.rel (0) target = $region41
    $region40: #{tpu_custom_call.1} parent=1 // pred_region
      %251 = dma.done [#allocation4], 32
    $region41: #{tpu_custom_call.1} parent=1 // pred_fallthru
      _
    %252 = vsyncpa [#allocation3], 1
    %253 = vsyncpa [#allocation6], 1
    %254 = vsyncpa [#allocation4], 1

</llo_original>
